<compile_context>
chip_gen: v7x
topology: tpu7x:2x2x1
jax: 0.10.0
libtpu: 0.0.40
codegen_flags: <defaults>
</compile_context>

<pallas_src>
import jax
import jax.numpy as jnp
from jax import lax
from jax.experimental import pallas as pl
from jax.experimental.pallas import tpu as pltpu

LAMBDA_ROOT = 1.0
LAMBDA_DISP = 0.1

_LANES = 128
_TILE_TARGET_BYTES = 8 * 1024 * 1024   # per-input tile target (review: ~8 MiB)
_TILE_MIN_BYTES = 2 * 1024 * 1024      # floor so tiny/medium inputs keep chunky tiles


def _round_up(x, m):
    return -(-x // m) * m


def _sublane_multiple(itemsize):
    return {4: 8, 2: 16, 1: 32}.get(itemsize, 8)


def _vmem_capacity_bytes():
    """Generation-aware VMEM capacity (v5e/v6e 128 MiB, v7x 64 MiB)."""
    try:
        cap = int(pltpu.get_tpu_info().vmem_capacity_bytes)
        if cap > 0:
            return cap
    except Exception:
        pass
    return 64 * 1024 * 1024   # conservative fallback (v7x per-TC VMEM)


def _make_spm_kernel(t_b, C, t_s, out_rows, B, HWB, mask_b, mask_s):
    """Per-tile kernel for blocks of shape [t_b, C, t_s, 128].

    lanes = 128 spatial positions, sublanes = t_s spatial groups; C and batch are
    major axes so channel slicing is free.  Writes a [out_rows, 128] f32 partial.
    """

    def kernel(pred_ref, tgt_ref, out_ref):
        pred = pred_ref[...].astype(jnp.float32)   # [t_b, C, t_s, 128]
        tgt = tgt_ref[...].astype(jnp.float32)

        true_root = tgt[:, 0]                      # [t_b, t_s, 128]   (major-axis slice)
        true_disp = tgt[:, 1:]                     # [t_b, 2K, t_s, 128]
        present = true_root > 0.0                  # encode_target mask (root joint present)

        # Root joints: MSE(reduction='sum') on sigmoid(pred) * mask.
        pred_root = jnp.where(present, jax.nn.sigmoid(pred[:, 0]), 0.0)
        d_root = pred_root - true_root
        root_sq = d_root * d_root                  # [t_b, t_s, 128]

        # Displacements: SmoothL1(reduction='sum', beta=1) on tanh(pred) * mask.
        pred_disp = jnp.where(present[:, None], jnp.tanh(pred[:, 1:]), 0.0)
        d = pred_disp - true_disp
        ad = jnp.abs(d)
        sl1 = jnp.where(ad < 1.0, 0.5 * (d * d), ad - 0.5)
        disp_sum = jnp.sum(sl1, axis=1)            # channel reduce (major axis, VPU adds)

        # Per spatial position partial; lambdas only touch 1/C of the elements.
        per_pos = LAMBDA_ROOT * root_sq + LAMBDA_DISP * disp_sum   # [t_b, t_s, 128]

        # Tail masking: only emitted when the grid actually has partial tiles.
        if mask_b or mask_s:
            ok = None
            if mask_b:
                bi = lax.broadcasted_iota(jnp.int32, (t_b, t_s, _LANES), 0)
                ok = bi < (B - pl.program_id(0) * t_b)
            if mask_s:
                si = lax.broadcasted_iota(jnp.int32, (t_b, t_s, _LANES), 1)
                ok_s = si < (HWB - pl.program_id(1) * t_s)
                ok = ok_s if ok is None else jnp.logical_and(ok, ok_s)
            per_pos = jnp.where(ok, per_pos, 0.0)

        part = jnp.sum(per_pos, axis=0)            # [t_s, 128]  (batch is major: VPU adds)

        # Fold sublane rows down to a lane-dense [out_rows, 128] partial so the
        # per-step output store is a small unmasked vst.
        if t_s > out_rows:                         # only when t_s % out_rows == 0
            part = jnp.sum(part.reshape(t_s // out_rows, out_rows, _LANES), axis=0)

        out_ref[...] = part[None, None]            # (1, 1, out_rows, 128)

    return kernel


def _choose_tiles(B, C, HWB, itemsize, target_bytes):
    """Pick (t_b, t_s).  t_s is a multiple of the sublane quantum or == HWB, so the
    last-two-dims constraint always holds; non-divisor tails use in-kernel masks."""
    sub = _sublane_multiple(itemsize)
    row_bytes = C * _LANES * itemsize                          # one spatial row, all channels
    per_batch = C * _round_up(HWB, sub) * _LANES * itemsize    # one batch element (VMEM-padded)

    if per_batch <= target_bytes:
        # Whole spatial extent per step; pack batch elements to fill the budget.
        t_s = HWB
        t_b = max(1, min(B, target_bytes // per_batch))
        # Prefer an exact divisor of B (skips batch-tail masking) unless it costs >2x packing.
        for d in range(t_b, 0, -1):
            if B % d == 0:
                if 2 * d >= t_b:
                    t_b = d
                break
    else:
        # Tile the spatial-group (sublane) axis in multiples of the sublane quantum.
        t_b = 1
        t_s = max(sub, (target_bytes // row_bytes) // sub * sub)
        t_s = min(t_s, HWB)
    return t_b, t_s


def spm_loss_pallas(inp, target, *, tile_target_bytes=None):
    """inp, target: [B, 1 + 2*num_keypoints, H, W] (NCHW, float32 or bfloat16).
    Returns the scalar SPM loss (float32), matching the PyTorch module forward."""
    assert inp.ndim == 4 and inp.shape == target.shape
    if target.dtype != inp.dtype:
        target = target.astype(inp.dtype)

    B, C, H, W = inp.shape
    HW = H * W
    itemsize = jnp.dtype(inp.dtype).itemsize
    sub = _sublane_multiple(itemsize)

    # ---- layout: [B, C, HW] -> [B, C, HWB, 128] (lane-dense last dim) ----
    x3 = inp.reshape(B, C, HW)
    t3 = target.reshape(B, C, HW)
    pad = (-HW) % _LANES
    if pad:
        # Zero spatial padding is exactly loss-neutral (zero target => mask 0 =>
        # zero residuals for both MSE and SmoothL1).  Costs one extra copy, only
        # for spatial sizes that are not a multiple of 128.
        x3 = jnp.pad(x3, ((0, 0), (0, 0), (0, pad)))
        t3 = jnp.pad(t3, ((0, 0), (0, 0), (0, pad)))
    HWB = (HW + pad) // _LANES
    x4 = x3.reshape(B, C, HWB, _LANES)
    t4 = t3.reshape(B, C, HWB, _LANES)

    # ---- generation/dtype-aware tile budget ----
    vmem_budget = int(0.7 * _vmem_capacity_bytes())
    # Peak VMEM ~= 4 input tiles (2 inputs x double buffering) + in-kernel f32
    # elementwise temporaries (~4.5 f32 tiles; relative to the tile that is 2x for bf16).
    tmp_tiles = 4.5 * (4.0 / itemsize)
    max_tile = max(128 * 1024, int((vmem_budget - (2 << 20)) / (4.0 + tmp_tiles)))

    per_batch = C * _round_up(HWB, sub) * _LANES * itemsize
    total_padded = B * per_batch
    if tile_target_bytes is None:
        # ~8 MiB tiles hide the ~0.35us per-step cost; the total/8 cap keeps >= ~8
        # grid steps for big inputs so v7x's two TensorCores both get work.
        target = min(_TILE_TARGET_BYTES, max(_TILE_MIN_BYTES, total_padded // 8))
    else:
        target = int(tile_target_bytes)
    target = max(min(target, max_tile), 128 * 1024)

    t_b, t_s = _choose_tiles(B, C, HWB, itemsize, target)
    grid_b = pl.cdiv(B, t_b)
    grid_s = pl.cdiv(HWB, t_s)
    mask_b = (B % t_b) != 0
    mask_s = (HWB % t_s) != 0

    fold = (t_s > 8) and (t_s % 8 == 0)
    out_rows = 8 if fold else t_s

    kernel = _make_spm_kernel(t_b, C, t_s, out_rows, B, HWB, mask_b, mask_s)

    # ---- VMEM limit: only bump past the per-generation default when needed ----
    tile_bytes = t_b * C * _round_up(t_s, sub) * _LANES * itemsize
    vmem_need = int((4.0 + tmp_tiles) * tile_bytes) + (1 << 20)
    extra = {}
    if vmem_need > 12 * 1024 * 1024:
        extra["vmem_limit_bytes"] = int(min(max(vmem_need * 5 // 4, 16 << 20), vmem_budget))

    n_elems = B * C * HWB * _LANES
    cost = pl.CostEstimate(
        flops=int(10 * n_elems),
        transcendentals=int(n_elems),
        bytes_accessed=int(2 * n_elems * itemsize + grid_b * grid_s * out_rows * _LANES * 4),
    )

    partials = pl.pallas_call(
        kernel,
        out_shape=jax.ShapeDtypeStruct((grid_b, grid_s, out_rows, _LANES), jnp.float32),
        grid_spec=pltpu.PrefetchScalarGridSpec(
            num_scalar_prefetch=0,
            grid=(grid_b, grid_s),
            in_specs=[
                pl.BlockSpec((t_b, C, t_s, _LANES), lambda i, j: (i, 0, j, 0)),
                pl.BlockSpec((t_b, C, t_s, _LANES), lambda i, j: (i, 0, j, 0)),
            ],
            out_specs=pl.BlockSpec((1, 1, out_rows, _LANES), lambda i, j: (i, j, 0, 0)),
        ),
        compiler_params=pltpu.CompilerParams(
            dimension_semantics=("parallel", "parallel"), **extra),
        cost_estimate=cost,
    )(x4, t4)

    # Glue: sum the per-tile partials and divide by batch size (matches the module).
    return (jnp.sum(partials) / B).astype(jnp.float32)


def spm_loss_reference(inp, target):
    """Pure-JAX reference mirroring the PyTorch forward, for verification."""
    B = inp.shape[0]
    pred = jnp.transpose(inp, (0, 2, 3, 1)).astype(jnp.float32)   # NHWC
    tgt = jnp.transpose(target, (0, 2, 3, 1)).astype(jnp.float32)
    pred_root = jax.nn.sigmoid(pred[..., :1])
    pred_disp = jnp.tanh(pred[..., 1:])
    true_root = tgt[..., :1]
    true_disp = tgt[..., 1:]
    mask = jnp.where(true_root > 0.0, 1.0, 0.0)
    loss_root = jnp.sum((pred_root * mask - true_root) ** 2)
    d = pred_disp * mask - true_disp
    ad = jnp.abs(d)
    loss_disp = jnp.sum(jnp.where(ad < 1.0, 0.5 * d * d, ad - 0.5))
    return (LAMBDA_ROOT * loss_root + LAMBDA_DISP * loss_disp) / B


if __name__ == "__main__":
    def make_inputs(key, B, K, H, W, dtype=jnp.float32):
        C = 1 + 2 * K
        k1, k2, k3 = jax.random.split(key, 3)
        x = jax.random.normal(k1, (B, C, H, W), dtype=jnp.float32)
        root = (jax.random.uniform(k2, (B, 1, H, W)) > 0.8).astype(jnp.float32)
        disp = jax.random.normal(k3, (B, 2 * K, H, W), dtype=jnp.float32) * root
        tgt = jnp.concatenate([root, disp], axis=1)
        return x.astype(dtype), tgt.astype(dtype)

    # 1) Canonical small shapes: batch=2, num_keypoints=4 (C=9), 16x16.
    x, t = make_inputs(jax.random.PRNGKey(0), 2, 4, 16, 16)
    got = jax.block_until_ready(spm_loss_pallas(x, t))
    want = jax.block_until_ready(spm_loss_reference(x, t))
    assert jnp.allclose(got, want, rtol=1e-4, atol=1e-4), (got, want)

    # 2) bf16 inputs (halves HBM traffic; math stays f32 in-kernel).
    got = jax.block_until_ready(spm_loss_pallas(x.astype(jnp.bfloat16), t.astype(jnp.bfloat16)))
    want = jax.block_until_ready(spm_loss_reference(x.astype(jnp.bfloat16), t.astype(jnp.bfloat16)))
    assert jnp.allclose(got, want, rtol=1e-3, atol=1e-3), (got, want)

    # 3) Spatial size not a multiple of 128 (10x10): loss-neutral pad path.
    x, t = make_inputs(jax.random.PRNGKey(1), 2, 4, 10, 10)
    got = jax.block_until_ready(spm_loss_pallas(x, t))
    want = jax.block_until_ready(spm_loss_reference(x, t))
    assert jnp.allclose(got, want, rtol=1e-4, atol=1e-4), (got, want)

    # 4) Forced small tiles on 64x64: sublane tiling, non-divisor spatial tail mask,
    #    the [8,128] fold and a multi-step fully-parallel grid.
    x, t = make_inputs(jax.random.PRNGKey(2), 2, 4, 64, 64)
    got = jax.block_until_ready(spm_loss_pallas(x, t, tile_target_bytes=128 * 1024))
    want = jax.block_until_ready(spm_loss_reference(x, t))
    assert jnp.allclose(got, want, rtol=1e-4, atol=1e-4), (got, want)

    # 5) Batch-tail mask: B=7 packed 4 per step.
    x, t = make_inputs(jax.random.PRNGKey(3), 7, 4, 16, 16)
    got = jax.block_until_ready(spm_loss_pallas(x, t, tile_target_bytes=150 * 1024))
    want = jax.block_until_ready(spm_loss_reference(x, t))
    assert jnp.allclose(got, want, rtol=1e-4, atol=1e-4), (got, want)

    print("KERNEL_OK")
</pallas_src>

<mosaic_0001>
module attributes {stable_mosaic.version = 11 : i64} {
  func.func @kernel(%arg0: i32, %arg1: i32, %arg2: memref<2x9x2x128xf32, #tpu.memory_space<vmem>>, %arg3: memref<2x9x2x128xf32, #tpu.memory_space<vmem>>, %arg4: memref<1x1x2x128xf32, #tpu.memory_space<vmem>>) attributes {dimension_semantics = [#tpu.dimension_semantics<parallel>, #tpu.dimension_semantics<parallel>], iteration_bounds = array<i64: 1, 1>, scalar_prefetch = 0 : i64, scratch_operands = 0 : i64, tpu.core_type = #tpu.core_type<tc>, window_params = [{transform_indices = @transform_0, window_bounds = array<i64: 2, 9, 2, 128>}, {transform_indices = @transform_1, window_bounds = array<i64: 2, 9, 2, 128>}, {transform_indices = @transform_2, window_bounds = array<i64: 1, 1, 2, 128>}]} {
    %c0 = arith.constant 0 : index
    %c0_0 = arith.constant 0 : index
    %c0_1 = arith.constant 0 : index
    %c0_2 = arith.constant 0 : index
    %0 = vector.load %arg2[%c0, %c0_0, %c0_1, %c0_2] : memref<2x9x2x128xf32, #tpu.memory_space<vmem>>, vector<2x9x2x128xf32>
    %c0_3 = arith.constant 0 : index
    %c0_4 = arith.constant 0 : index
    %c0_5 = arith.constant 0 : index
    %c0_6 = arith.constant 0 : index
    %1 = vector.load %arg3[%c0_3, %c0_4, %c0_5, %c0_6] : memref<2x9x2x128xf32, #tpu.memory_space<vmem>>, vector<2x9x2x128xf32>
    %2 = vector.extract_strided_slice %1 {offsets = [0, 0, 0, 0], sizes = [2, 1, 2, 128], strides = [1, 1, 1, 1]} : vector<2x9x2x128xf32> to vector<2x1x2x128xf32>
    %3 = vector.shape_cast %2 : vector<2x1x2x128xf32> to vector<2x2x128xf32>
    %4 = vector.extract_strided_slice %1 {offsets = [0, 1, 0, 0], sizes = [2, 8, 2, 128], strides = [1, 1, 1, 1]} : vector<2x9x2x128xf32> to vector<2x8x2x128xf32>
    %cst = arith.constant 0.000000e+00 : f32
    %5 = vector.broadcast %cst : f32 to vector<2x2x128xf32>
    %6 = arith.cmpf ogt, %3, %5 : vector<2x2x128xf32>
    %7 = vector.extract_strided_slice %0 {offsets = [0, 0, 0, 0], sizes = [2, 1, 2, 128], strides = [1, 1, 1, 1]} : vector<2x9x2x128xf32> to vector<2x1x2x128xf32>
    %8 = vector.shape_cast %7 : vector<2x1x2x128xf32> to vector<2x2x128xf32>
    %9 = arith.negf %8 : vector<2x2x128xf32>
    %10 = math.exp %9 : vector<2x2x128xf32>
    %cst_7 = arith.constant 1.000000e+00 : f32
    %11 = vector.broadcast %cst_7 : f32 to vector<2x2x128xf32>
    %12 = arith.addf %11, %10 : vector<2x2x128xf32>
    %13 = arith.divf %11, %12 : vector<2x2x128xf32>
    %cst_8 = arith.constant 0.000000e+00 : f32
    %14 = vector.broadcast %cst_8 : f32 to vector<2x2x128xf32>
    %15 = arith.select %6, %13, %14 : vector<2x2x128xi1>, vector<2x2x128xf32>
    %16 = arith.subf %15, %3 : vector<2x2x128xf32>
    %17 = arith.mulf %16, %16 : vector<2x2x128xf32>
    %18 = vector.shape_cast %6 : vector<2x2x128xi1> to vector<2x1x2x128xi1>
    %19 = vector.extract_strided_slice %0 {offsets = [0, 1, 0, 0], sizes = [2, 8, 2, 128], strides = [1, 1, 1, 1]} : vector<2x9x2x128xf32> to vector<2x8x2x128xf32>
    %20 = math.tanh %19 : vector<2x8x2x128xf32>
    %cst_9 = arith.constant 0.000000e+00 : f32
    %21 = vector.shape_cast %18 : vector<2x1x2x128xi1> to vector<2x1x2x128xi1>
    %22 = vector.broadcast %21 : vector<2x1x2x128xi1> to vector<2x8x2x128xi1>
    %23 = vector.broadcast %cst_9 : f32 to vector<2x8x2x128xf32>
    %24 = arith.select %22, %20, %23 : vector<2x8x2x128xi1>, vector<2x8x2x128xf32>
    %25 = arith.subf %24, %4 : vector<2x8x2x128xf32>
    %26 = math.absf %25 : vector<2x8x2x128xf32>
    %cst_10 = arith.constant 1.000000e+00 : f32
    %27 = vector.broadcast %cst_10 : f32 to vector<2x8x2x128xf32>
    %28 = arith.cmpf olt, %26, %27 : vector<2x8x2x128xf32>
    %29 = arith.mulf %25, %25 : vector<2x8x2x128xf32>
    %cst_11 = arith.constant 5.000000e-01 : f32
    %30 = vector.broadcast %cst_11 : f32 to vector<2x8x2x128xf32>
    %31 = arith.mulf %30, %29 : vector<2x8x2x128xf32>
    %cst_12 = arith.constant 5.000000e-01 : f32
    %32 = vector.broadcast %cst_12 : f32 to vector<2x8x2x128xf32>
    %33 = arith.subf %26, %32 : vector<2x8x2x128xf32>
    %34 = arith.select %28, %31, %33 : vector<2x8x2x128xi1>, vector<2x8x2x128xf32>
    %cst_13 = arith.constant dense<0.000000e+00> : vector<2x2x128xf32>
    %35 = vector.multi_reduction <add>, %34, %cst_13 [1] : vector<2x8x2x128xf32> to vector<2x2x128xf32>
    %cst_14 = arith.constant 1.000000e+00 : f32
    %36 = vector.broadcast %cst_14 : f32 to vector<2x2x128xf32>
    %37 = arith.mulf %36, %17 : vector<2x2x128xf32>
    %cst_15 = arith.constant 1.000000e-01 : f32
    %38 = vector.broadcast %cst_15 : f32 to vector<2x2x128xf32>
    %39 = arith.mulf %38, %35 : vector<2x2x128xf32>
    %40 = arith.addf %37, %39 : vector<2x2x128xf32>
    %cst_16 = arith.constant dense<0.000000e+00> : vector<2x128xf32>
    %41 = vector.multi_reduction <add>, %40, %cst_16 [0] : vector<2x2x128xf32> to vector<2x128xf32>
    %42 = vector.shape_cast %41 : vector<2x128xf32> to vector<1x1x2x128xf32>
    %c0_17 = arith.constant 0 : index
    %c0_18 = arith.constant 0 : index
    %c0_19 = arith.constant 0 : index
    %c0_20 = arith.constant 0 : index
    %43 = vector.load %arg4[%c0_17, %c0_18, %c0_19, %c0_20] : memref<1x1x2x128xf32, #tpu.memory_space<vmem>>, vector<1x1x2x128xf32>
    tpu.vector_store %arg4[%c0_17, %c0_18, %c0_19, %c0_20], %42 {strides = array<i32>} : memref<1x1x2x128xf32, #tpu.memory_space<vmem>>, vector<1x1x2x128xf32>,
    return
  }
  func.func @transform_0(%arg0: i32, %arg1: i32) -> (i32, i32, i32, i32) {
    %c0_i32 = arith.constant 0 : i32
    %c0_i32_0 = arith.constant 0 : i32
    %c0_i32_1 = arith.constant 0 : i32
    return %arg0, %c0_i32, %arg1, %c0_i32_0 : i32, i32, i32, i32
  }
  func.func @transform_1(%arg0: i32, %arg1: i32) -> (i32, i32, i32, i32) {
    %c0_i32 = arith.constant 0 : i32
    %c0_i32_0 = arith.constant 0 : i32
    %c0_i32_1 = arith.constant 0 : i32
    return %arg0, %c0_i32, %arg1, %c0_i32_0 : i32, i32, i32, i32
  }
  func.func @transform_2(%arg0: i32, %arg1: i32) -> (i32, i32, i32, i32) {
    %c0_i32 = arith.constant 0 : i32
    %c0_i32_0 = arith.constant 0 : i32
    %c0_i32_1 = arith.constant 0 : i32
    return %arg0, %arg1, %c0_i32, %c0_i32_0 : i32, i32, i32, i32
  }
}

</mosaic_0001>

<llo_original>
// kernel: tpu_custom_call.1
$region0: #{tpu_custom_call.1}
  #allocation0 [shape = 'u32[]', space=smem, size = 0x4, offset = 0x4, fixed_abs, tag = 'smem constant byte address 0x4 - core index']
  #allocation1 [shape = 'u32[144,128]{1,0:T(1,128)}', space=vmem, size = 0x12000, scoped, tag = 'internal scratch']
  %s0 = inlined_call_operand.hbm [shape: f32[2,9,2,128], index: 0, kind: input, shape index: {}]
  %s1 = inlined_call_operand.hbm [shape: f32[2,9,2,128], index: 1, kind: input, shape index: {}]
  %s2 = inlined_call_operand.hbm [shape: f32[1,1,2,128], index: 2, kind: output, shape index: {}]
  %s3 = sld [smem:[#allocation0]]
  $region26: #{tpu_custom_call.1} parent=0
    _
  %s5 = ssub.s32 1, %s3
  %s6 = scalar_select 0, %s5, %s3
  $region1: #{tpu_custom_call.1} parent=0
    #allocation2 [shape = 'u8[18432]{0}', space=vmem, size = 0x4800, scoped, tag = 'input window, operand 0, single buffered']
    #allocation3 [shape = 's32[1]{0}', space=sflag, size = 0x4, scoped, tag = 'scoped memory for tpu_custom_call.1']
    #allocation4 [shape = 's32[1]{0}', space=sflag, size = 0x4, scoped, tag = 'scoped memory for tpu_custom_call.1']
    #allocation5 [shape = 'u8[18432]{0}', space=vmem, size = 0x4800, scoped, tag = 'input window, operand 1, single buffered']
    #allocation6 [shape = 's32[1]{0}', space=sflag, size = 0x4, scoped, tag = 'scoped memory for tpu_custom_call.1']
    #allocation7 [shape = 'u8[1024]{0}', space=vmem, size = 0x400, scoped, tag = 'output window, operand 0, single buffered']
    %7 = vsyncpa [#allocation3], 0
    %8 = vsyncpa [#allocation6], 0
    %9 = vsyncpa [#allocation4], 0
    // Predicated region
    $region2: #{tpu_custom_call.1} parent=1 // pred_check
      _
    $region3: #{tpu_custom_call.1} parent=1 // pred_check_branch
      %11 = sbr.rel (0) target = $region5
    $region4: #{tpu_custom_call.1} parent=1 // pred_region
      %s13 = ssub.s32 576, 576
      %14 = vsyncadd [#allocation3], %s13
      %s15 = sshll.u32 [#allocation2], 4
      %s16 = int_to_ptr.vmem [resolvable:$true] %s15
      %21 = dma.hbm_to_vmem [thread:$0]  %s0, 576, %s16, [#allocation3], 32, 32, 2
    $region5: #{tpu_custom_call.1} parent=1 // pred_fallthru
      _
    // Predicated region
    $region6: #{tpu_custom_call.1} parent=1 // pred_check
      _
    $region7: #{tpu_custom_call.1} parent=1 // pred_check_branch
      %23 = sbr.rel (0) target = $region9
    $region8: #{tpu_custom_call.1} parent=1 // pred_region
      %s25 = ssub.s32 576, 576
      %26 = vsyncadd [#allocation6], %s25
      %s27 = sshll.u32 [#allocation5], 4
      %s28 = int_to_ptr.vmem [resolvable:$true] %s27
      %33 = dma.hbm_to_vmem [thread:$0]  %s1, 576, %s28, [#allocation6], 32, 32, 2
    $region9: #{tpu_custom_call.1} parent=1 // pred_fallthru
      _
    // Predicated region
    $region10: #{tpu_custom_call.1} parent=1 // pred_check
      _
    $region11: #{tpu_custom_call.1} parent=1 // pred_check_branch
      %35 = sbr.rel (0) target = $region13
    $region12: #{tpu_custom_call.1} parent=1 // pred_region
      %36 = dma.done [#allocation3], 576
    $region13: #{tpu_custom_call.1} parent=1 // pred_fallthru
      _
    // Predicated region
    $region14: #{tpu_custom_call.1} parent=1 // pred_check
      _
    $region15: #{tpu_custom_call.1} parent=1 // pred_check_branch
      %38 = sbr.rel (0) target = $region17
    $region16: #{tpu_custom_call.1} parent=1 // pred_region
      %39 = dma.done [#allocation6], 576
    $region17: #{tpu_custom_call.1} parent=1 // pred_fallthru
      _
    %v40 = vld [vmem:[#allocation2] sm:$0x3]
    %v41 = vld [vmem:[#allocation2 + $0x2] sm:$0x3]
    %v42 = vld [vmem:[#allocation2 + $0x4] sm:$0x3]
    %v43 = vld [vmem:[#allocation2 + $0x6] sm:$0x3]
    %v44 = vld [vmem:[#allocation2 + $0x8] sm:$0x3]
    %v45 = vld [vmem:[#allocation2 + $0xa] sm:$0x3]
    %v46 = vld [vmem:[#allocation2 + $0xc] sm:$0x3]
    %v47 = vld [vmem:[#allocation2 + $0xe] sm:$0x3]
    %v48 = vld [vmem:[#allocation2 + $0x10] sm:$0x3]
    %v49 = vld [vmem:[#allocation2 + $0x12] sm:$0x3]
    %v50 = vld [vmem:[#allocation2 + $0x14] sm:$0x3]
    %v51 = vld [vmem:[#allocation2 + $0x16] sm:$0x3]
    %v52 = vld [vmem:[#allocation2 + $0x18] sm:$0x3]
    %v53 = vld [vmem:[#allocation2 + $0x1a] sm:$0x3]
    %v54 = vld [vmem:[#allocation2 + $0x1c] sm:$0x3]
    %v55 = vld [vmem:[#allocation2 + $0x1e] sm:$0x3]
    %v56 = vld [vmem:[#allocation2 + $0x20] sm:$0x3]
    %v57 = vld [vmem:[#allocation2 + $0x22] sm:$0x3]
    %v58 = vld [vmem:[#allocation5] sm:$0x3]
    %v59 = vld [vmem:[#allocation5 + $0x2] sm:$0x3]
    %v60 = vld [vmem:[#allocation5 + $0x4] sm:$0x3]
    %v61 = vld [vmem:[#allocation5 + $0x6] sm:$0x3]
    %v62 = vld [vmem:[#allocation5 + $0x8] sm:$0x3]
    %v63 = vld [vmem:[#allocation5 + $0xa] sm:$0x3]
    %v64 = vld [vmem:[#allocation5 + $0xc] sm:$0x3]
    %v65 = vld [vmem:[#allocation5 + $0xe] sm:$0x3]
    %v66 = vld [vmem:[#allocation5 + $0x10] sm:$0x3]
    %v67 = vld [vmem:[#allocation5 + $0x12] sm:$0x3]
    %v68 = vld [vmem:[#allocation5 + $0x14] sm:$0x3]
    %v69 = vld [vmem:[#allocation5 + $0x16] sm:$0x3]
    %v70 = vld [vmem:[#allocation5 + $0x18] sm:$0x3]
    %v71 = vld [vmem:[#allocation5 + $0x1a] sm:$0x3]
    %v72 = vld [vmem:[#allocation5 + $0x1c] sm:$0x3]
    %v73 = vld [vmem:[#allocation5 + $0x1e] sm:$0x3]
    %v74 = vld [vmem:[#allocation5 + $0x20] sm:$0x3]
    %v75 = vld [vmem:[#allocation5 + $0x22] sm:$0x3]
    %vm76 = vcmp.gt.f32.partialorder %v58, 0.0
    %vm77 = vcmp.gt.f32.partialorder %v67, 0.0
    %v78 = vxor.u32 %v40, 2147483648
    %v79 = vxor.u32 %v49, 2147483648
    %v80 = vmul.f32 %v78, 1.442695
    %v81 = vpow.pop %v80
    %v82 = vmul.f32 %v79, 1.442695
    %v83 = vpow.pop %v82
    %v84 = vadd.f32 %v81, 1.0
    %v85 = vadd.f32 %v83, 1.0
    %v86 = vrcp.pop %v84
    %v87 = vmul.f32 1.0, %v86
    %v88 = vrcp.pop %v85
    %v89 = vmul.f32 1.0, %v88
    %v90 = vsel %vm76, %v87, 0.0
    %v91 = vsel %vm77, %v89, 0.0
    %v92 = vsub.f32 %v90, %v58
    %v93 = vsub.f32 %v91, %v67
    %v94 = vmul.f32 %v92, %v92
    %v95 = vmul.f32 %v93, %v93
    %v96 = vtanh.pop %v41
    %v97 = vtanh.pop %v42
    %v98 = vtanh.pop %v43
    %v99 = vtanh.pop %v44
    %v100 = vtanh.pop %v45
    %v101 = vtanh.pop %v46
    %v102 = vtanh.pop %v47
    %v103 = vtanh.pop %v48
    %v104 = vtanh.pop %v50
    %v105 = vtanh.pop %v51
    %v106 = vtanh.pop %v52
    %v107 = vtanh.pop %v53
    %v108 = vtanh.pop %v54
    %v109 = vtanh.pop %v55
    %v110 = vtanh.pop %v56
    %v111 = vtanh.pop %v57
    %v112 = vsel %vm76, 1, 0
    %v113 = vsel %vm77, 1, 0
    %vm114 = vcmp.eq.s32.totalorder %v112, 1
    %vm115 = vcmp.eq.s32.totalorder %v113, 1
    %v116 = vsel %vm114, %v96, 0.0
    %v117 = vsel %vm114, %v97, 0.0
    %v118 = vsel %vm114, %v98, 0.0
    %v119 = vsel %vm114, %v99, 0.0
    %v120 = vsel %vm114, %v100, 0.0
    %v121 = vsel %vm114, %v101, 0.0
    %v122 = vsel %vm114, %v102, 0.0
    %v123 = vsel %vm114, %v103, 0.0
    %v124 = vsel %vm115, %v104, 0.0
    %v125 = vsel %vm115, %v105, 0.0
    %v126 = vsel %vm115, %v106, 0.0
    %v127 = vsel %vm115, %v107, 0.0
    %v128 = vsel %vm115, %v108, 0.0
    %v129 = vsel %vm115, %v109, 0.0
    %v130 = vsel %vm115, %v110, 0.0
    %v131 = vsel %vm115, %v111, 0.0
    %v132 = vsub.f32 %v116, %v59
    %v133 = vsub.f32 %v117, %v60
    %v134 = vsub.f32 %v118, %v61
    %v135 = vsub.f32 %v119, %v62
    %v136 = vsub.f32 %v120, %v63
    %v137 = vsub.f32 %v121, %v64
    %v138 = vsub.f32 %v122, %v65
    %v139 = vsub.f32 %v123, %v66
    %v140 = vsub.f32 %v124, %v68
    %v141 = vsub.f32 %v125, %v69
    %v142 = vsub.f32 %v126, %v70
    %v143 = vsub.f32 %v127, %v71
    %v144 = vsub.f32 %v128, %v72
    %v145 = vsub.f32 %v129, %v73
    %v146 = vsub.f32 %v130, %v74
    %v147 = vsub.f32 %v131, %v75
    %v148 = vand.u32 2147483647, %v132
    %v149 = vand.u32 2147483647, %v133
    %v150 = vand.u32 2147483647, %v134
    %v151 = vand.u32 2147483647, %v135
    %v152 = vand.u32 2147483647, %v136
    %v153 = vand.u32 2147483647, %v137
    %v154 = vand.u32 2147483647, %v138
    %v155 = vand.u32 2147483647, %v139
    %v156 = vand.u32 2147483647, %v140
    %v157 = vand.u32 2147483647, %v141
    %v158 = vand.u32 2147483647, %v142
    %v159 = vand.u32 2147483647, %v143
    %v160 = vand.u32 2147483647, %v144
    %v161 = vand.u32 2147483647, %v145
    %v162 = vand.u32 2147483647, %v146
    %v163 = vand.u32 2147483647, %v147
    %vm164 = vcmp.lt.f32.partialorder %v148, 1.0
    %vm165 = vcmp.lt.f32.partialorder %v149, 1.0
    %vm166 = vcmp.lt.f32.partialorder %v150, 1.0
    %vm167 = vcmp.lt.f32.partialorder %v151, 1.0
    %vm168 = vcmp.lt.f32.partialorder %v152, 1.0
    %vm169 = vcmp.lt.f32.partialorder %v153, 1.0
    %vm170 = vcmp.lt.f32.partialorder %v154, 1.0
    %vm171 = vcmp.lt.f32.partialorder %v155, 1.0
    %vm172 = vcmp.lt.f32.partialorder %v156, 1.0
    %vm173 = vcmp.lt.f32.partialorder %v157, 1.0
    %vm174 = vcmp.lt.f32.partialorder %v158, 1.0
    %vm175 = vcmp.lt.f32.partialorder %v159, 1.0
    %vm176 = vcmp.lt.f32.partialorder %v160, 1.0
    %vm177 = vcmp.lt.f32.partialorder %v161, 1.0
    %vm178 = vcmp.lt.f32.partialorder %v162, 1.0
    %vm179 = vcmp.lt.f32.partialorder %v163, 1.0
    %v180 = vmul.f32 %v132, %v132
    %v181 = vmul.f32 %v133, %v133
    %v182 = vmul.f32 %v134, %v134
    %v183 = vmul.f32 %v135, %v135
    %v184 = vmul.f32 %v136, %v136
    %v185 = vmul.f32 %v137, %v137
    %v186 = vmul.f32 %v138, %v138
    %v187 = vmul.f32 %v139, %v139
    %v188 = vmul.f32 %v140, %v140
    %v189 = vmul.f32 %v141, %v141
    %v190 = vmul.f32 %v142, %v142
    %v191 = vmul.f32 %v143, %v143
    %v192 = vmul.f32 %v144, %v144
    %v193 = vmul.f32 %v145, %v145
    %v194 = vmul.f32 %v146, %v146
    %v195 = vmul.f32 %v147, %v147
    %v196 = vmul.f32 %v180, 0.5
    %v197 = vmul.f32 %v181, 0.5
    %v198 = vmul.f32 %v182, 0.5
    %v199 = vmul.f32 %v183, 0.5
    %v200 = vmul.f32 %v184, 0.5
    %v201 = vmul.f32 %v185, 0.5
    %v202 = vmul.f32 %v186, 0.5
    %v203 = vmul.f32 %v187, 0.5
    %v204 = vmul.f32 %v188, 0.5
    %v205 = vmul.f32 %v189, 0.5
    %v206 = vmul.f32 %v190, 0.5
    %v207 = vmul.f32 %v191, 0.5
    %v208 = vmul.f32 %v192, 0.5
    %v209 = vmul.f32 %v193, 0.5
    %v210 = vmul.f32 %v194, 0.5
    %v211 = vmul.f32 %v195, 0.5
    %v212 = vsub.f32 %v148, 0.5
    %v213 = vsub.f32 %v149, 0.5
    %v214 = vsub.f32 %v150, 0.5
    %v215 = vsub.f32 %v151, 0.5
    %v216 = vsub.f32 %v152, 0.5
    %v217 = vsub.f32 %v153, 0.5
    %v218 = vsub.f32 %v154, 0.5
    %v219 = vsub.f32 %v155, 0.5
    %v220 = vsub.f32 %v156, 0.5
    %v221 = vsub.f32 %v157, 0.5
    %v222 = vsub.f32 %v158, 0.5
    %v223 = vsub.f32 %v159, 0.5
    %v224 = vsub.f32 %v160, 0.5
    %v225 = vsub.f32 %v161, 0.5
    %v226 = vsub.f32 %v162, 0.5
    %v227 = vsub.f32 %v163, 0.5
    %v228 = vsel %vm164, %v196, %v212
    %v229 = vsel %vm165, %v197, %v213
    %v230 = vsel %vm166, %v198, %v214
    %v231 = vsel %vm167, %v199, %v215
    %v232 = vsel %vm168, %v200, %v216
    %v233 = vsel %vm169, %v201, %v217
    %v234 = vsel %vm170, %v202, %v218
    %v235 = vsel %vm171, %v203, %v219
    %v236 = vsel %vm172, %v204, %v220
    %v237 = vsel %vm173, %v205, %v221
    %v238 = vsel %vm174, %v206, %v222
    %v239 = vsel %vm175, %v207, %v223
    %v240 = vsel %vm176, %v208, %v224
    %v241 = vsel %vm177, %v209, %v225
    %v242 = vsel %vm178, %v210, %v226
    %v243 = vsel %vm179, %v211, %v227
    %vm244 = vcmask 1041408
    %v245 = vsel %vm244, %v228, 0.0
    %v246 = vsel %vm244, %v229, 0.0
    %v247 = vadd.f32 %v245, %v246
    %v248 = vsel %vm244, %v230, 0.0
    %v249 = vadd.f32 %v247, %v248
    %v250 = vsel %vm244, %v231, 0.0
    %v251 = vadd.f32 %v249, %v250
    %v252 = vsel %vm244, %v232, 0.0
    %v253 = vadd.f32 %v251, %v252
    %v254 = vsel %vm244, %v233, 0.0
    %v255 = vadd.f32 %v253, %v254
    %v256 = vsel %vm244, %v234, 0.0
    %v257 = vadd.f32 %v255, %v256
    %v258 = vsel %vm244, %v235, 0.0
    %v259 = vadd.f32 %v257, %v258
    %v260 = vsel %vm244, %v236, 0.0
    %v261 = vsel %vm244, %v237, 0.0
    %v262 = vadd.f32 %v260, %v261
    %v263 = vsel %vm244, %v238, 0.0
    %v264 = vadd.f32 %v262, %v263
    %v265 = vsel %vm244, %v239, 0.0
    %v266 = vadd.f32 %v264, %v265
    %v267 = vsel %vm244, %v240, 0.0
    %v268 = vadd.f32 %v266, %v267
    %v269 = vsel %vm244, %v241, 0.0
    %v270 = vadd.f32 %v268, %v269
    %v271 = vsel %vm244, %v242, 0.0
    %v272 = vadd.f32 %v270, %v271
    %v273 = vsel %vm244, %v243, 0.0
    %v274 = vadd.f32 %v272, %v273
    %v275 = vmul.f32 %v259, 0.1
    %v276 = vmul.f32 %v274, 0.1
    %v277 = vadd.f32 %v94, %v275
    %v278 = vadd.f32 %v95, %v276
    %v279 = vsel %vm244, %v277, 0.0
    %v280 = vsel %vm244, %v278, 0.0
    %v281 = vadd.f32 %v279, %v280
    %282 = vst [vmem:[#allocation7] sm:$0x3] %v281
    // Predicated region
    $region18: #{tpu_custom_call.1} parent=1 // pred_check
      _
    $region19: #{tpu_custom_call.1} parent=1 // pred_check_branch
      %284 = sbr.rel (0) target = $region21
    $region20: #{tpu_custom_call.1} parent=1 // pred_region
      %s286 = ssub.s32 32, 32
      %287 = vsyncadd [#allocation4], %s286
      %s289 = sshll.u32 [#allocation7], 4
      %s290 = int_to_ptr.vmem [resolvable:$true] %s289
      %292 = dma.vmem_to_hbm [thread:$0]  %s290, 32, %s2, [#allocation4]
    $region21: #{tpu_custom_call.1} parent=1 // pred_fallthru
      _
    // Predicated region
    $region22: #{tpu_custom_call.1} parent=1 // pred_check
      _
    $region23: #{tpu_custom_call.1} parent=1 // pred_check_branch
      %294 = sbr.rel (0) target = $region25
    $region24: #{tpu_custom_call.1} parent=1 // pred_region
      %295 = dma.done [#allocation4], 32
    $region25: #{tpu_custom_call.1} parent=1 // pred_fallthru
      _
    %296 = vsyncpa [#allocation3], 1
    %297 = vsyncpa [#allocation6], 1
    %298 = vsyncpa [#allocation4], 1

</llo_original>
